<compile_context>
chip_gen: v7x
topology: tpu7x:2x2x1
jax: 0.10.0
libtpu: 0.0.40
codegen_flags: <defaults>
</compile_context>

<pallas_src>
import math
from functools import partial

import jax
import jax.numpy as jnp
from jax.experimental import pallas as pl
from jax.experimental.pallas import tpu as pltpu

_LANE = 128
_MAX_BLOCK_BYTES = 4 * 1024 * 1024      # per-block VMEM target (x2 buffers, x in/out)
_VMEM_LIMIT = 32 * 1024 * 1024          # covers v5e's 16 MiB default scoped limit
_SUBLANE = {4: 8, 2: 16, 1: 32}         # dtype-aware sublane packing


def _round_up(a: int, b: int) -> int:
    return ((a + b - 1) // b) * b


# -----------------------------------------------------------------------------
# Kernels: one VPU multiply per vreg.  Accumulate in f32, cast once on the store.
# -----------------------------------------------------------------------------
def _rows_kernel(scale_ref, x_ref, o_ref):
    """x_ref: (1, tile_r, 128) block of one sample; scale_ref: (B,) f32 in SMEM."""
    s = scale_ref[pl.program_id(0)]                       # per-sample scalar, f32
    o_ref[...] = (x_ref[...].astype(jnp.float32) * s).astype(o_ref.dtype)


def _cols_kernel(scale_ref, x_ref, o_ref):
    """x_ref: (tile_b, tile_n) block; scale_ref: (tile_b, 1) f32 column."""
    o_ref[...] = (x_ref[...].astype(jnp.float32) * scale_ref[...]).astype(o_ref.dtype)


# -----------------------------------------------------------------------------
# Dispatch paths.
# -----------------------------------------------------------------------------
def _run_rows(x_flat, scale, B, N, itemsize):
    """Lane-dense per-sample rows: (B, R, 128) view, zero layout overhead."""
    R = N // _LANE
    sub = _SUBLANE.get(itemsize, 8)
    max_rows = _MAX_BLOCK_BYTES // (_LANE * itemsize)     # 8192 rows f32, 16384 bf16
    n_row_tiles = pl.cdiv(R, max_rows)
    if B == 1 and n_row_tiles == 1 and R >= 2 * sub:
        n_row_tiles = 2                                   # keep both v7x TCs busy
    tile_r = _round_up(pl.cdiv(R, n_row_tiles), sub) if n_row_tiles > 1 else R

    x3 = x_flat.reshape(B, R, _LANE)
    out = pl.pallas_call(
        _rows_kernel,
        out_shape=jax.ShapeDtypeStruct((B, R, _LANE), x_flat.dtype),
        grid=(B, pl.cdiv(R, tile_r)),
        in_specs=[
            pl.BlockSpec(memory_space=pltpu.MemorySpace.SMEM),          # (B,) scales
            pl.BlockSpec((1, tile_r, _LANE), lambda b, j: (b, j, 0)),
        ],
        out_specs=pl.BlockSpec((1, tile_r, _LANE), lambda b, j: (b, j, 0)),
        compiler_params=pltpu.CompilerParams(
            dimension_semantics=("parallel", "parallel"),
            vmem_limit_bytes=_VMEM_LIMIT,
        ),
    )(scale, x3)
    return out.reshape(B, N)


def _run_cols(x_flat, scale, B, N, itemsize):
    """Direct (B, N) column streaming: handles ragged N (Pallas masks the tail)
    and large-B / small-N (few big DMAs) without any pad/slice HBM passes."""
    if B <= 8:
        tile_b = B                                         # == full dim, allowed
    else:
        tile_b = min((B // 8) * 8, 1024)                   # sublane-dense batch tile
    max_cols = max(_LANE, ((_MAX_BLOCK_BYTES // (tile_b * itemsize)) // _LANE) * _LANE)
    tile_n = max(_LANE, min(max_cols, (N // _LANE) * _LANE))

    out = pl.pallas_call(
        _cols_kernel,
        out_shape=jax.ShapeDtypeStruct((B, N), x_flat.dtype),
        grid=(pl.cdiv(B, tile_b), pl.cdiv(N, tile_n)),
        in_specs=[
            pl.BlockSpec((tile_b, 1), lambda i, j: (i, 0)),            # scale column
            pl.BlockSpec((tile_b, tile_n), lambda i, j: (i, j)),
        ],
        out_specs=pl.BlockSpec((tile_b, tile_n), lambda i, j: (i, j)),
        compiler_params=pltpu.CompilerParams(
            dimension_semantics=("parallel", "parallel"),
            vmem_limit_bytes=_VMEM_LIMIT,
        ),
    )(scale[:, None], x_flat)
    return out


@partial(jax.jit, static_argnames=("p", "training"))
def drop_path(x, seed, *, p: float, training: bool = True):
    """DropPath forward.  `seed` must differ per layer / training step."""
    if p == 0.0 or not training:
        return x

    keep_prob = 1.0 - p
    B = x.shape[0]
    N = math.prod(x.shape[1:])
    itemsize = jnp.dtype(x.dtype).itemsize

    # Per-sample Bernoulli(keep_prob) via floor(keep_prob + U[0,1)), as in the module.
    u = jax.random.uniform(jax.random.PRNGKey(seed), (B,), dtype=jnp.float32)
    scale = jnp.floor(jnp.float32(keep_prob) + u) * jnp.float32(1.0 / keep_prob)  # (B,) f32

    x_flat = x.reshape(B, N)
    aligned = (N % _LANE == 0)
    # Prefer the per-sample rows view unless the batch is big enough to make
    # (B, N) column streaming sublane-dense AND the per-sample payload is small
    # (large-B / small-N regime -> few large contiguous DMAs).
    use_rows = aligned and (B < 8 or N * itemsize >= 64 * 1024)
    if use_rows:
        out_flat = _run_rows(x_flat, scale, B, N, itemsize)
    else:
        out_flat = _run_cols(x_flat, scale, B, N, itemsize)
    return out_flat.reshape(x.shape)


if __name__ == "__main__":
    p = 0.3
    keep_prob = 1.0 - p
    seed = 0

    def ref_mask(b):  # identical draw to the wrapper (same seed, same batch size)
        u = jax.random.uniform(jax.random.PRNGKey(seed), (b,), dtype=jnp.float32)
        return jnp.floor(jnp.float32(keep_prob) + u)

    # 1) Aligned case: (2, 4, 16, 16) -> 1024 elems/sample (exact 128-lane rows).
    x = jax.random.normal(jax.random.PRNGKey(0), (2, 4, 16, 16), dtype=jnp.float32)
    out = jax.block_until_ready(drop_path(x, seed, p=p, training=True))
    m = ref_mask(2)
    expected = (x / keep_prob) * m[:, None, None, None]
    assert jnp.allclose(out, expected, atol=1e-5, rtol=1e-5), "aligned-path mismatch"
    for b in range(x.shape[0]):
        ob = out[b]
        assert jnp.allclose(ob, 0.0) or jnp.allclose(
            ob, x[b] / keep_prob, atol=1e-5, rtol=1e-5
        ), "per-sample scaling mismatch"

    # 2) Unaligned case (2, 3, 7, 7): exercises the copy-free (B, N) column path.
    x2 = jax.random.normal(jax.random.PRNGKey(1), (2, 3, 7, 7), dtype=jnp.float32)
    out2 = jax.block_until_ready(drop_path(x2, seed, p=p, training=True))
    expected2 = (x2 / keep_prob) * m[:, None, None, None]
    assert jnp.allclose(out2, expected2, atol=1e-5, rtol=1e-5), "unaligned-path mismatch"

    # 3) bf16 input: scale stays f32 inside the kernel, single cast on the store.
    xb = x.astype(jnp.bfloat16)
    outb = jax.block_until_ready(drop_path(xb, seed, p=p, training=True))
    expb = ((xb.astype(jnp.float32) / keep_prob) * m[:, None, None, None]).astype(jnp.bfloat16)
    assert jnp.allclose(outb.astype(jnp.float32), expb.astype(jnp.float32),
                        atol=1e-2, rtol=1e-2), "bf16-path mismatch"

    # 4) Large-batch / small-sample shape routes to the column path (few big DMAs).
    x3 = jax.random.normal(jax.random.PRNGKey(2), (16, 8, 32), dtype=jnp.float32)
    out3 = jax.block_until_ready(drop_path(x3, seed, p=p, training=True))
    expected3 = (x3 / keep_prob) * ref_mask(16)[:, None, None]
    assert jnp.allclose(out3, expected3, atol=1e-5, rtol=1e-5), "large-batch mismatch"

    # 5) Eval / p == 0 are identity.
    assert jnp.array_equal(jax.block_until_ready(drop_path(x, seed, p=p, training=False)), x)
    assert jnp.array_equal(jax.block_until_ready(drop_path(x, seed, p=0.0, training=True)), x)

    print("KERNEL_OK")
</pallas_src>

<mosaic_0001>
module attributes {stable_mosaic.version = 11 : i64} {
  func.func @_rows_kernel(%arg0: i32, %arg1: i32, %arg2: memref<2xf32, #tpu.memory_space<smem>>, %arg3: memref<1x8x128xf32, #tpu.memory_space<vmem>>, %arg4: memref<1x8x128xf32, #tpu.memory_space<vmem>>) attributes {dimension_semantics = [#tpu.dimension_semantics<parallel>, #tpu.dimension_semantics<parallel>], iteration_bounds = array<i64: 2, 1>, scalar_prefetch = 0 : i64, scratch_operands = 0 : i64, tpu.core_type = #tpu.core_type<tc>, window_params = [{transform_indices = @transform_0, window_bounds = array<i64: 2>}, {transform_indices = @transform_1, window_bounds = array<i64: 1, 8, 128>}, {transform_indices = @transform_2, window_bounds = array<i64: 1, 8, 128>}]} {
    %0 = arith.index_cast %arg0 : i32 to index
    %1 = memref.load %arg2[%0] : memref<2xf32, #tpu.memory_space<smem>>
    %c0 = arith.constant 0 : index
    %c0_0 = arith.constant 0 : index
    %c0_1 = arith.constant 0 : index
    %2 = vector.load %arg3[%c0, %c0_0, %c0_1] : memref<1x8x128xf32, #tpu.memory_space<vmem>>, vector<1x8x128xf32>
    %3 = vector.broadcast %1 : f32 to vector<1x8x128xf32>
    %4 = arith.mulf %2, %3 : vector<1x8x128xf32>
    %c0_2 = arith.constant 0 : index
    %c0_3 = arith.constant 0 : index
    %c0_4 = arith.constant 0 : index
    %5 = vector.load %arg4[%c0_2, %c0_3, %c0_4] : memref<1x8x128xf32, #tpu.memory_space<vmem>>, vector<1x8x128xf32>
    tpu.vector_store %arg4[%c0_2, %c0_3, %c0_4], %4 {strides = array<i32>} : memref<1x8x128xf32, #tpu.memory_space<vmem>>, vector<1x8x128xf32>,
    return
  }
  func.func @transform_0(%arg0: i32, %arg1: i32) -> i32 {
    %c0_i32 = arith.constant 0 : i32
    %c0_i32_0 = arith.constant 0 : i32
    return %c0_i32 : i32
  }
  func.func @transform_1(%arg0: i32, %arg1: i32) -> (i32, i32, i32) {
    %c0_i32 = arith.constant 0 : i32
    %c0_i32_0 = arith.constant 0 : i32
    return %arg0, %arg1, %c0_i32 : i32, i32, i32
  }
  func.func @transform_2(%arg0: i32, %arg1: i32) -> (i32, i32, i32) {
    %c0_i32 = arith.constant 0 : i32
    %c0_i32_0 = arith.constant 0 : i32
    return %arg0, %arg1, %c0_i32 : i32, i32, i32
  }
}

</mosaic_0001>

<llo_original>
// kernel: drop_path.1
$region0: #{drop_path.1}
  #allocation0 [shape = 'u32[]', space=smem, size = 0x4, offset = 0x4, fixed_abs, tag = 'smem constant byte address 0x4 - core index']
  #allocation1 [shape = 'u32[144,128]{1,0:T(1,128)}', space=vmem, size = 0x12000, scoped, tag = 'internal scratch']
  %s0 = inlined_call_operand.vmem [shape: f32[2], index: 0, kind: input, shape index: {}]
  %s1 = inlined_call_operand.vmem [shape: f32[2,8,128], index: 1, kind: input, shape index: {}]
  %s2 = inlined_call_operand.vmem [shape: f32[2,8,128], index: 2, kind: output, shape index: {}]
  %s3 = sld [smem:[#allocation0]]
  $region45: #{drop_path.1} parent=0
    _
  %s5 = ssub.s32 1, %s3
  %s6 = scalar_select 0, %s5, %s3
  $region1: #{drop_path.1} parent=0
    #allocation2 [shape = 'u8[512]{0}', space=smem, size = 0x200, scoped, tag = 'input window, operand 0, single buffered']
    #allocation3 [shape = 's32[2]{0}', space=sflag, size = 0x8, scoped, tag = 'scoped memory for drop_path.1']
    %7 = vsyncpa [#allocation3], 0
    loop: start=0, step=1, limit=4
    $region2: #{drop_path.1} parent=1 // loop_pre_header
      _
    $region3: #{drop_path.1} parent=1 // loop_header
      %s9 = sphi 0, %s13
      %p10 = scmp.ge.s32.totalorder %s9, 4
      %s16 = sphi 0, %s28
      %s17 = sphi 0, %s24
      %s18 = sphi 0, %s16
      %s19 = sphi 0, %s17
      %s20 = sphi 0, %s18
      %s21 = sphi 0, %s19
      %s29 = sphi 0, %s29
      %s31 = sphi 0, %s29
      %s32 = sphi 0, %s31
      %s46 = sphi 0, %s32
      %s54 = sphi 0, %s56
      %s57 = sphi 0, %s54
      %s58 = sphi 0, %s57
      %s74 = sphi 0, %s58
      %s82 = sphi 0, %s84
      %s85 = sphi 0, %s82
      %s86 = sphi 0, %s85
      %s102 = sphi 0, %s86
    $region4: #{drop_path.1} parent=1 // loop_header_branch
      %12 = sbr.rel (%p10) target = $region8
    $region5: #{drop_path.1} parent=1 // loop_body
      %s14 = ssub.s32 %s9, 1
      %s15 = ssub.s32 %s9, 2
      %s22 = sadd.s32 1, %s17
      %p23 = scmp.ge.s32.totalorder %s22, 1
      %s24 = scalar_select %p23, 0, %s22
      %s25 = sadd.s32 1, %s16
      %s26 = scalar_select %p23, %s25, %s16
      %p27 = scmp.ge.s32.totalorder %s26, 2
      %s28 = scalar_select %p27, 0, %s26
      %s30 = sadd.s32 %s29, 1
      %p33 = scmp.eq.s32.totalorder %s9, 1
      %p34 = scmp.ne.s32.totalorder %s29, %s31
      %p35 = scmp.eq.s32.totalorder %s9, 0
      %p36 = por %p34, %p35
      %p37 = scmp.ne.s32.totalorder %s29, %s31
      %p38 = scmp.eq.s32.totalorder %s14, 1
      %p39 = por %p37, %p38
      %p40 = scmp.ne.s32.totalorder %s31, %s32
      %p41 = scmp.eq.s32.totalorder %s14, 0
      %p42 = por %p40, %p41
      %p43 = scmp.ne.s32.totalorder %s31, %s32
      %p44 = scmp.eq.s32.totalorder %s15, 1
      %p45 = por %p43, %p44
      %p47 = scmp.ne.s32.totalorder %s32, %s46
      %p48 = scmp.eq.s32.totalorder %s15, 0
      %p49 = por %p47, %p48
      %s50 = ssub.s32 %s16, %s28
      %s51 = ssub.s32 %s17, %s24
      %s52 = sor.u32 %s50, %s51
      %p53 = scmp.eq.s32.totalorder %s52, 0
      %s55 = sadd.s32 %s54, 1
      %s56 = scalar_select %p53, %s54, %s55
      %p59 = pneg %p53
      %p60 = scmp.eq.s32.totalorder %s9, 1
      %p61 = por %p59, %p60
      %p62 = scmp.ne.s32.totalorder %s54, %s57
      %p63 = scmp.eq.s32.totalorder %s9, 0
      %p64 = por %p62, %p63
      %p65 = scmp.ne.s32.totalorder %s54, %s57
      %p66 = scmp.eq.s32.totalorder %s14, 1
      %p67 = por %p65, %p66
      %p68 = scmp.ne.s32.totalorder %s57, %s58
      %p69 = scmp.eq.s32.totalorder %s14, 0
      %p70 = por %p68, %p69
      %p71 = scmp.ne.s32.totalorder %s57, %s58
      %p72 = scmp.eq.s32.totalorder %s15, 1
      %p73 = por %p71, %p72
      %p75 = scmp.ne.s32.totalorder %s58, %s74
      %p76 = scmp.eq.s32.totalorder %s15, 0
      %p77 = por %p75, %p76
      %s78 = ssub.s32 %s16, %s28
      %s79 = ssub.s32 %s17, %s24
      %s80 = sor.u32 %s78, %s79
      %p81 = scmp.eq.s32.totalorder %s80, 0
      %s83 = sadd.s32 %s82, 1
      %s84 = scalar_select %p81, %s82, %s83
      %p87 = pneg %p81
      %p88 = scmp.eq.s32.totalorder %s9, 1
      %p89 = por %p87, %p88
      %p90 = scmp.ne.s32.totalorder %s82, %s85
      %p91 = scmp.eq.s32.totalorder %s9, 0
      %p92 = por %p90, %p91
      %p93 = scmp.ne.s32.totalorder %s82, %s85
      %p94 = scmp.eq.s32.totalorder %s14, 1
      %p95 = por %p93, %p94
      %p96 = scmp.ne.s32.totalorder %s85, %s86
      %p97 = scmp.eq.s32.totalorder %s14, 0
      %p98 = por %p96, %p97
      %p99 = scmp.ne.s32.totalorder %s85, %s86
      %p100 = scmp.eq.s32.totalorder %s15, 1
      %p101 = por %p99, %p100
      %p103 = scmp.ne.s32.totalorder %s86, %s102
      %p104 = scmp.eq.s32.totalorder %s15, 0
      %p105 = por %p103, %p104
      %p106 = scmp.le.s32.totalorder 1, %s9
      %p107 = scmp.lt.s32.totalorder %s9, 3
      %p108 = pnand %p106, %p107
      %p109 = pneg %p108
      // Predicated region
      $region9: #{drop_path.1} parent=5 // pred_check
        _
      $region10: #{drop_path.1} parent=5 // pred_check_branch
        %111 = sbr.rel (%p108) target = $region12
      $region11: #{drop_path.1} parent=5 // pred_region
        %s112 = ssub.s32 %s9, 1
        // Predicated region
        $region13: #{drop_path.1} parent=11 // pred_check
          %p113 = pneg %p42
        $region14: #{drop_path.1} parent=11 // pred_check_branch
          %115 = sbr.rel (%p113) target = $region16
        $region15: #{drop_path.1} parent=11 // pred_region
          %s117 = ssub.s32 16, 16
          %118 = vsyncadd [#allocation3], %s117
          %s120 = sshll.u32 %s0, 4
          %s121 = int_to_ptr.vmem [resolvable:$true] %s120
          %123 = dma.vmem_to_smem %s121, 16, [#allocation2], [#allocation3]
        $region16: #{drop_path.1} parent=11 // pred_fallthru
          _
      $region12: #{drop_path.1} parent=5 // pred_fallthru
        _
      %p124 = scmp.lt.s32.totalorder %s9, 2
      // Predicated region
      $region17: #{drop_path.1} parent=5 // pred_check
        %p125 = pneg %p124
      $region18: #{drop_path.1} parent=5 // pred_check_branch
        %127 = sbr.rel (%p125) target = $region20
      $region19: #{drop_path.1} parent=5 // pred_region
        // Predicated region
        $region21: #{drop_path.1} parent=19 // pred_check
          %p128 = pneg %p64
        $region22: #{drop_path.1} parent=19 // pred_check_branch
          %130 = sbr.rel (%p128) target = $region24
        $region23: #{drop_path.1} parent=19 // pred_region
          %p131 = scmp.lt.s32.totalorder %s16, 1
          %s132 = scalar_select %p131, %s16, 1
          %p133 = scmp.lt.s32.totalorder %s17, 0
          %s134 = scalar_select %p133, %s17, 0
          %s135 = sadd.s32 %s134, %s132
          %s136 = smul.addr %s135, 8
          %s137 = scalar_lea.vmem %s1, %s136
        $region24: #{drop_path.1} parent=19 // pred_fallthru
          _
      $region20: #{drop_path.1} parent=5 // pred_fallthru
        _
      %p138 = scmp.le.s32.totalorder 1, %s9
      %p139 = scmp.lt.s32.totalorder %s9, 3
      %p140 = pnand %p138, %p139
      %p141 = pneg %p140
      // Predicated region
      $region25: #{drop_path.1} parent=5 // pred_check
        _
      $region26: #{drop_path.1} parent=5 // pred_check_branch
        %143 = sbr.rel (%p140) target = $region28
      $region27: #{drop_path.1} parent=5 // pred_region
        %s144 = ssub.s32 %s9, 1
        // Predicated region
        $region29: #{drop_path.1} parent=27 // pred_check
          %p145 = pneg %p42
        $region30: #{drop_path.1} parent=27 // pred_check_branch
          %147 = sbr.rel (%p145) target = $region32
        $region31: #{drop_path.1} parent=27 // pred_region
          %148 = dma.done [#allocation3], 16
        $region32: #{drop_path.1} parent=27 // pred_fallthru
          _
        %149 = sfence
        %p150 = pneg %p42
        %p151 = pneg %p39
        %p152 = scmp.lt.s32.totalorder %s18, 1
        %s153 = scalar_select %p152, %s18, 1
        %p154 = scmp.lt.s32.totalorder %s19, 0
        %s155 = scalar_select %p154, %s19, 0
        %s156 = sadd.s32 %s155, %s153
        %s157 = smul.addr %s156, 8
        %s158 = scalar_lea.vmem %s1, %s157
        %p159 = pneg %p70
        %p160 = pneg %p67
        %p161 = pneg %p98
        %p162 = pneg %p95
        %p163 = scmp.lt.s32.totalorder %s18, 1
        %s164 = scalar_select %p163, %s18, 1
        %p165 = scmp.lt.s32.totalorder %s19, 0
        %s166 = scalar_select %p165, %s19, 0
        %s167 = sadd.s32 %s166, %s164
        %s168 = smul.addr %s167, 8
        %s169 = scalar_lea.vmem %s2, %s168
        %p170 = scmp.lt.s32.totalorder %s18, 1
        %s171 = scalar_select %p170, %s18, 1
        %p172 = scmp.lt.s32.totalorder %s19, 0
        %s173 = scalar_select %p172, %s19, 0
        %s174 = sadd.s32 %s173, %s171
        %s175 = smul.addr %s174, 8
        %s176 = scalar_lea.vmem %s1, %s175
        %p177 = scmp.lt.s32.totalorder %s18, 1
        %s178 = scalar_select %p177, %s18, 1
        %p179 = scmp.lt.s32.totalorder %s19, 0
        %s180 = scalar_select %p179, %s19, 0
        %s181 = sadd.s32 %s180, %s178
        %s182 = smul.addr %s181, 8
        %s183 = scalar_lea.vmem %s2, %s182
        %s184 = sld [smem:[#allocation2 + %s18]]
        %v185 = vld [vmem:[%s176] sm:$0xff]
        %v186 = vstv %s184
        %v187 = vmul.f32 %v185, %v186
        %188 = vst [vmem:[%s183] sm:$0xff] %v187
        %p189 = scmp.lt.s32.totalorder %s18, 1
        %s190 = scalar_select %p189, %s18, 1
        %p191 = scmp.lt.s32.totalorder %s19, 0
        %s192 = scalar_select %p191, %s19, 0
        %s193 = sadd.s32 %s192, %s190
        %s194 = smul.addr %s193, 8
        %s195 = scalar_lea.vmem %s2, %s194
        // Predicated region
        $region33: #{drop_path.1} parent=27 // pred_check
          %p196 = pneg %p95
        $region34: #{drop_path.1} parent=27 // pred_check_branch
          %198 = sbr.rel (%p196) target = $region36
        $region35: #{drop_path.1} parent=27 // pred_region
          _
        $region36: #{drop_path.1} parent=27 // pred_fallthru
          _
      $region28: #{drop_path.1} parent=5 // pred_fallthru
        _
      %p199 = scmp.le.s32.totalorder 2, %s9
      // Predicated region
      $region37: #{drop_path.1} parent=5 // pred_check
        %p200 = pneg %p199
      $region38: #{drop_path.1} parent=5 // pred_check_branch
        %202 = sbr.rel (%p200) target = $region40
      $region39: #{drop_path.1} parent=5 // pred_region
        %s203 = ssub.s32 %s9, 2
        // Predicated region
        $region41: #{drop_path.1} parent=39 // pred_check
          %p204 = pneg %p101
        $region42: #{drop_path.1} parent=39 // pred_check_branch
          %206 = sbr.rel (%p204) target = $region44
        $region43: #{drop_path.1} parent=39 // pred_region
          %p207 = scmp.lt.s32.totalorder %s20, 1
          %s208 = scalar_select %p207, %s20, 1
          %p209 = scmp.lt.s32.totalorder %s21, 0
          %s210 = scalar_select %p209, %s21, 0
          %s211 = sadd.s32 %s210, %s208
          %s212 = smul.addr %s211, 8
          %s213 = scalar_lea.vmem %s2, %s212
        $region44: #{drop_path.1} parent=39 // pred_fallthru
          _
      $region40: #{drop_path.1} parent=5 // pred_fallthru
        _
    $region6: #{drop_path.1} parent=1 // loop_footer
      %s13 = sadd.s32 1, %s9
    $region7: #{drop_path.1} parent=1 // loop_footer_branch
      %8 = sbr.rel target = $region3
    $region8: #{drop_path.1} parent=1 // loop_exit
      _
    %214 = vsyncpa [#allocation3], 1
    %s215 = scalar_lea.sflag [#allocation3], 1
    %216 = vsyncpa %s215, 1

</llo_original>
